<compile_context>
chip_gen: v6e
topology: v6e:2x2x1
jax: 0.10.0
libtpu: 0.0.40
codegen_flags: <defaults>
</compile_context>

<pallas_src>
import functools

import jax
import jax.numpy as jnp
import numpy as np
from jax.experimental import pallas as pl
from jax.experimental.pallas import tpu as pltpu


def _round_up(v, m):
    return (v + m - 1) // m * m


def _attention_pooling_kernel(idxc_ref, idxr_ref, x_ref, w_ref, b_ref,
                              out_ref, m_sc, eye_sc, *, gate_col, ones_col):
    t = pl.program_id(0)
    num_tiles = pl.num_programs(0)
    tn = x_ref.shape[0]
    sp = out_ref.shape[0]

    @pl.when(t == 0)
    def _init():
        out_ref[...] = jnp.zeros_like(out_ref)
        m_sc[...] = jnp.full_like(m_sc, -1e30)
        # One-time Sp x Sp identity: relayouts [1,Sp] rows into [Sp,1] columns
        # with one tiny MXU matmul per tile (replaces the per-tile O(Sp^2)
        # iota/select/cross-lane eye-reduce flagged by the review).
        eye_sc[...] = (
            jax.lax.broadcasted_iota(jnp.int32, (sp, sp), 0)
            == jax.lax.broadcasted_iota(jnp.int32, (sp, sp), 1)
        ).astype(jnp.float32)

    # Fused matmul (bf16 in, f32 accumulate) + resident bias row.
    # Columns of `fused`: [ message(D) | gate | 1.0 | 0-pad ].
    fused = jnp.dot(x_ref[...], w_ref[...],
                    preferred_element_type=jnp.float32) + b_ref[...]          # [TN, F]
    gate = fused[:, gate_col:gate_col + 1]                                    # [TN, 1]

    idx_col = idxc_ref[...]                                                   # [TN, 1]
    idx_row = idxr_ref[...]                                                   # [1, TN]

    # Membership masks; padded nodes carry the out-of-range sentinel -> all false.
    maskN = idx_col == jax.lax.broadcasted_iota(jnp.int32, (tn, sp), 1)       # [TN, Sp]
    maskN_f = maskN.astype(jnp.float32)
    maskT_f = (jax.lax.broadcasted_iota(jnp.int32, (sp, tn), 0)
               == idx_row).astype(jnp.float32)                               # [Sp, TN]

    # ---- flash-style online per-segment max ----
    tile_max_row = jnp.max(jnp.where(maskN, gate, -1e30),
                           axis=0, keepdims=True)                            # [1, Sp]
    tile_max_col = jax.lax.dot_general(                                       # [Sp, 1]
        eye_sc[...], tile_max_row,
        dimension_numbers=(((1,), (1,)), ((), ())),
        preferred_element_type=jnp.float32)
    m_old = m_sc[...]                                                         # [Sp, 1]
    m_new = jnp.maximum(m_old, tile_max_col)
    alpha = jnp.exp(m_old - m_new)                                            # [Sp, 1]
    m_sc[...] = m_new

    # Gather the updated per-segment max back to nodes on the MXU (review #6).
    m_node = jnp.dot(maskN_f, m_new, preferred_element_type=jnp.float32)      # [TN, 1]
    p = jnp.exp(gate - m_node)                                                # [TN, 1]

    # Masked scatter-add: [Sp,TN] @ [TN,F]; the ones column of `fused`
    # accumulates the softmax denominator for free.
    contrib = jnp.dot(maskT_f, p * fused,
                      preferred_element_type=jnp.float32)                     # [Sp, F]
    out_ref[...] = out_ref[...] * alpha + contrib

    @pl.when(t == num_tiles - 1)
    def _finalize():
        denom = out_ref[:, ones_col:ones_col + 1] + 1e-10                     # [Sp, 1]
        r = pl.reciprocal(denom, approx=True)          # EUP vrcp (free slot)
        r = r * (2.0 - denom * r)                      # one Newton step -> f32 accuracy
        out_ref[...] = out_ref[...] * r


def attention_pooling(x, index, gate_w, gate_b, msg_w, msg_b, num_segments,
                      *, compute_dtype=jnp.bfloat16, max_tile_nodes=512):
    """x: [N,H] f32, index: [N] int; Linear weights stored [in,out]. Returns [S,D] f32."""
    N, H = x.shape
    D = msg_w.shape[1]
    S = int(num_segments)

    F = _round_up(D + 2, 128)          # msg | gate | ones | pad   (lane-dense output)
    Sp = _round_up(S, 8)
    gcol, ocol = D, D + 1

    # Node tile: single tile for small N, otherwise a lane-friendly multi-tile size.
    if _round_up(N, 16) <= max_tile_nodes:
        TN = _round_up(N, 16)
    else:
        TN = _round_up(max_tile_nodes, 128)
    Np = _round_up(N, TN)
    num_tiles = Np // TN

    # x: row-pad only when needed, fused with the compute-dtype cast.  The hidden
    # dim is NOT padded any more -- the kernel streams x at its natural width.
    xc = x.astype(compute_dtype)
    if Np != N:
        xc = jnp.zeros((Np, H), compute_dtype).at[:N].set(xc)

    # Fused weight [H, F] and bias row [1, F]; the "ones" column lives entirely in
    # the bias row (its weight column is zero).
    fw = jnp.zeros((H, F), jnp.float32)
    fw = fw.at[:, :D].set(msg_w.astype(jnp.float32))
    fw = fw.at[:, gcol].set(gate_w[:, 0].astype(jnp.float32))
    fw = fw.astype(compute_dtype)
    fb = jnp.zeros((1, F), jnp.float32)
    fb = fb.at[0, :D].set(msg_b.astype(jnp.float32))
    fb = fb.at[0, gcol].set(gate_b.reshape(()).astype(jnp.float32))
    fb = fb.at[0, ocol].set(1.0)

    # Segment ids; padded rows get the out-of-range sentinel Sp (masked everywhere).
    idx_pad = jnp.full((Np,), Sp, jnp.int32).at[:N].set(index.astype(jnp.int32))
    idx_col = idx_pad.reshape(Np, 1)
    idx_row = idx_pad.reshape(1, Np)

    kernel = functools.partial(_attention_pooling_kernel,
                               gate_col=gcol, ones_col=ocol)

    # Explicit VMEM budget: double-buffered x/idx tiles + resident weight/bias +
    # resident accumulator + scratch + in-kernel temporaries.
    xbytes = jnp.dtype(compute_dtype).itemsize
    vmem_need = (2 * TN * (H * xbytes + 8)
                 + 2 * (H * F * xbytes + F * 4)
                 + Sp * F * 4
                 + Sp * Sp * 4 + Sp * 4
                 + 3 * TN * F * 4 + 3 * TN * Sp * 4)
    vmem_limit = int(min(max(2 * vmem_need, 32 * 1024 * 1024), 56 * 1024 * 1024))

    out_padded = pl.pallas_call(
        kernel,
        out_shape=jax.ShapeDtypeStruct((Sp, F), jnp.float32),
        grid_spec=pltpu.PrefetchScalarGridSpec(
            num_scalar_prefetch=0,
            grid=(num_tiles,),
            in_specs=[
                pl.BlockSpec((TN, 1), lambda t: (t, 0)),    # index, column form
                pl.BlockSpec((1, TN), lambda t: (0, t)),    # index, row form
                pl.BlockSpec((TN, H), lambda t: (t, 0)),    # x tile (no lane padding)
                pl.BlockSpec((H, F), lambda t: (0, 0)),     # fused weight (resident)
                pl.BlockSpec((1, F), lambda t: (0, 0)),     # fused bias row (resident)
            ],
            out_specs=pl.BlockSpec((Sp, F), lambda t: (0, 0)),  # resident accumulator
            scratch_shapes=[
                pltpu.VMEM((Sp, 1), jnp.float32),    # running per-segment max
                pltpu.VMEM((Sp, Sp), jnp.float32),   # identity for row->col relayout
            ],
        ),
        compiler_params=pltpu.CompilerParams(
            dimension_semantics=("arbitrary",),
            vmem_limit_bytes=vmem_limit),
    )(idx_col, idx_row, xc, fw, fb)

    return out_padded[:S, :D]


def reference(x, index, gate_w, gate_b, msg_w, msg_b, num_segments,
              matmul_dtype=jnp.float32):
    """Pure-JAX reference mirroring the PyTorch forward (matmuls optionally in
    matmul_dtype with f32 accumulation; softmax/scatter math in f32)."""
    xc = x.astype(matmul_dtype)
    gate = jnp.dot(xc, gate_w.astype(matmul_dtype),
                   preferred_element_type=jnp.float32) + gate_b[None, :]
    seg_max = jax.ops.segment_max(gate, index, num_segments=num_segments)
    gate = gate - seg_max[index]
    gate = jnp.exp(gate)
    seg_sum = jax.ops.segment_sum(gate, index, num_segments=num_segments)
    gate = gate / (seg_sum[index] + 1e-10)
    msg = jnp.dot(xc, msg_w.astype(matmul_dtype),
                  preferred_element_type=jnp.float32) + msg_b[None, :]
    return jax.ops.segment_sum(gate * msg, index, num_segments=num_segments)


if __name__ == "__main__":
    key = jax.random.PRNGKey(0)

    def make_inputs(k, n, h, d, s):
        kx, kidx, kgw, kgb, kmw, kmb = jax.random.split(k, 6)
        x = jax.random.normal(kx, (n, h), dtype=jnp.float32)
        index = jax.random.randint(kidx, (n,), 0, s, dtype=jnp.int32)
        gate_w = jax.random.normal(kgw, (h, 1), dtype=jnp.float32) * 0.1
        gate_b = jax.random.normal(kgb, (1,), dtype=jnp.float32) * 0.1
        msg_w = jax.random.normal(kmw, (h, d), dtype=jnp.float32) * 0.1
        msg_b = jax.random.normal(kmb, (d,), dtype=jnp.float32) * 0.1
        return x, index, gate_w, gate_b, msg_w, msg_b

    k0, k1 = jax.random.split(key)

    # Small single-tile case: nodes=16, hidden=32, message dim=32, 4 segments.
    N, H, D, S = 16, 32, 32, 4
    args = make_inputs(k0, N, H, D, S)

    # f32 path, tight check against the pure-JAX reference.
    out_f32 = jax.block_until_ready(
        attention_pooling(*args, S, compute_dtype=jnp.float32))
    ref_f32 = reference(*args, S)
    np.testing.assert_allclose(np.asarray(out_f32), np.asarray(ref_f32),
                               rtol=1e-5, atol=1e-5)

    # Default bf16 fast path, checked against a matching bf16-matmul reference.
    out_bf16 = jax.block_until_ready(attention_pooling(*args, S))
    ref_bf16 = reference(*args, S, matmul_dtype=jnp.bfloat16)
    np.testing.assert_allclose(np.asarray(out_bf16), np.asarray(ref_bf16),
                               rtol=1e-3, atol=1e-3)

    # Multi-tile case exercising the online (flash-style) segment max and the
    # padded-row sentinel path (nodes=300, tile=128 -> 3 grid steps).
    N2, H2, D2, S2 = 300, 32, 32, 6
    args2 = make_inputs(k1, N2, H2, D2, S2)
    out_mt = jax.block_until_ready(
        attention_pooling(*args2, S2, compute_dtype=jnp.float32,
                          max_tile_nodes=128))
    ref_mt = reference(*args2, S2)
    np.testing.assert_allclose(np.asarray(out_mt), np.asarray(ref_mt),
                               rtol=1e-5, atol=1e-5)

    print("KERNEL_OK")
</pallas_src>

<mosaic_0001>
module attributes {stable_mosaic.version = 11 : i64} {
  func.func @_attention_pooling_kernel(%arg0: i32, %arg1: memref<16x1xi32, #tpu.memory_space<vmem>>, %arg2: memref<1x16xi32, #tpu.memory_space<vmem>>, %arg3: memref<16x32xf32, #tpu.memory_space<vmem>>, %arg4: memref<32x128xf32, #tpu.memory_space<vmem>>, %arg5: memref<1x128xf32, #tpu.memory_space<vmem>>, %arg6: memref<8x128xf32, #tpu.memory_space<vmem>>, %arg7: memref<8x1xf32, #tpu.memory_space<vmem>>, %arg8: memref<8x8xf32, #tpu.memory_space<vmem>>) attributes {dimension_semantics = [#tpu.dimension_semantics<arbitrary>], iteration_bounds = array<i64: 1>, scalar_prefetch = 0 : i64, scratch_operands = 2 : i64, tpu.core_type = #tpu.core_type<tc>, window_params = [{transform_indices = @transform_0, window_bounds = array<i64: 16, 1>}, {transform_indices = @transform_1, window_bounds = array<i64: 1, 16>}, {transform_indices = @transform_2, window_bounds = array<i64: 16, 32>}, {pipeline_mode = #tpu.pipeline_mode<synchronous>, transform_indices = @transform_3, window_bounds = array<i64: 32, 128>}, {pipeline_mode = #tpu.pipeline_mode<synchronous>, transform_indices = @transform_4, window_bounds = array<i64: 1, 128>}, {pipeline_mode = #tpu.pipeline_mode<synchronous>, transform_indices = @transform_5, window_bounds = array<i64: 8, 128>}]} {
    %c0_i32 = arith.constant 0 : i32
    %0 = arith.cmpi eq, %arg0, %c0_i32 : i32
    %1 = arith.extui %0 : i1 to i32
    %c0_i32_0 = arith.constant 0 : i32
    %2 = arith.cmpi ne, %1, %c0_i32_0 : i32
    scf.if %2 {
      %cst_27 = arith.constant 0.000000e+00 : f32
      %49 = vector.broadcast %cst_27 : f32 to vector<8x128xf32>
      %c0_28 = arith.constant 0 : index
      %c0_29 = arith.constant 0 : index
      %50 = vector.load %arg6[%c0_28, %c0_29] : memref<8x128xf32, #tpu.memory_space<vmem>>, vector<8x128xf32>
      tpu.vector_store %arg6[%c0_28, %c0_29], %49 {strides = array<i32>} : memref<8x128xf32, #tpu.memory_space<vmem>>, vector<8x128xf32>,
      %cst_30 = arith.constant -1.000000e+30 : f32
      %51 = vector.broadcast %cst_30 : f32 to vector<8x1xf32>
      %c0_31 = arith.constant 0 : index
      %c0_32 = arith.constant 0 : index
      %52 = vector.load %arg7[%c0_31, %c0_32] : memref<8x1xf32, #tpu.memory_space<vmem>>, vector<8x1xf32>
      tpu.vector_store %arg7[%c0_31, %c0_32], %51 {strides = array<i32>} : memref<8x1xf32, #tpu.memory_space<vmem>>, vector<8x1xf32>,
      %53 = tpu.iota {dimensions = array<i32: 0>} : vector<8x8xi32>
      %54 = tpu.iota {dimensions = array<i32: 1>} : vector<8x8xi32>
      %55 = arith.cmpi eq, %53, %54 : vector<8x8xi32>
      %56 = arith.extui %55 : vector<8x8xi1> to vector<8x8xi32>
      %57 = arith.sitofp %56 : vector<8x8xi32> to vector<8x8xf32>
      %c0_33 = arith.constant 0 : index
      %c0_34 = arith.constant 0 : index
      %58 = vector.load %arg8[%c0_33, %c0_34] : memref<8x8xf32, #tpu.memory_space<vmem>>, vector<8x8xf32>
      tpu.vector_store %arg8[%c0_33, %c0_34], %57 {strides = array<i32>} : memref<8x8xf32, #tpu.memory_space<vmem>>, vector<8x8xf32>,
    } else {
    }
    %c0 = arith.constant 0 : index
    %c0_1 = arith.constant 0 : index
    %3 = vector.load %arg3[%c0, %c0_1] : memref<16x32xf32, #tpu.memory_space<vmem>>, vector<16x32xf32>
    %c0_2 = arith.constant 0 : index
    %c0_3 = arith.constant 0 : index
    %4 = vector.load %arg4[%c0_2, %c0_3] : memref<32x128xf32, #tpu.memory_space<vmem>>, vector<32x128xf32>
    %cst = arith.constant dense<0.000000e+00> : vector<16x128xf32>
    %5 = tpu.matmul %3, %4, %cst {dimension_numbers = #tpu.dot_dimension_numbers<[1], [0], [0], [1], [0, 0, 1, 1], [], []>} : vector<16x32xf32>, vector<32x128xf32>, vector<16x128xf32> -> vector<16x128xf32>
    %c0_4 = arith.constant 0 : index
    %c0_5 = arith.constant 0 : index
    %6 = vector.load %arg5[%c0_4, %c0_5] : memref<1x128xf32, #tpu.memory_space<vmem>>, vector<1x128xf32>
    %7 = vector.broadcast %6 : vector<1x128xf32> to vector<16x128xf32>
    %8 = arith.addf %5, %7 : vector<16x128xf32>
    %9 = vector.extract_strided_slice %8 {offsets = [0, 32], sizes = [16, 1], strides = [1, 1]} : vector<16x128xf32> to vector<16x1xf32>
    %c0_6 = arith.constant 0 : index
    %c0_7 = arith.constant 0 : index
    %10 = vector.load %arg1[%c0_6, %c0_7] : memref<16x1xi32, #tpu.memory_space<vmem>>, vector<16x1xi32>
    %c0_8 = arith.constant 0 : index
    %c0_9 = arith.constant 0 : index
    %11 = vector.load %arg2[%c0_8, %c0_9] : memref<1x16xi32, #tpu.memory_space<vmem>>, vector<1x16xi32>
    %12 = tpu.iota {dimensions = array<i32: 1>} : vector<16x8xi32>
    %13 = vector.broadcast %10 : vector<16x1xi32> to vector<16x8xi32>
    %14 = arith.cmpi eq, %13, %12 : vector<16x8xi32>
    %15 = arith.extui %14 : vector<16x8xi1> to vector<16x8xi32>
    %16 = arith.sitofp %15 : vector<16x8xi32> to vector<16x8xf32>
    %17 = tpu.iota {dimensions = array<i32: 0>} : vector<8x16xi32>
    %18 = vector.broadcast %11 : vector<1x16xi32> to vector<8x16xi32>
    %19 = arith.cmpi eq, %17, %18 : vector<8x16xi32>
    %20 = arith.extui %19 : vector<8x16xi1> to vector<8x16xi32>
    %21 = arith.sitofp %20 : vector<8x16xi32> to vector<8x16xf32>
    %cst_10 = arith.constant -1.000000e+30 : f32
    %22 = vector.shape_cast %9 : vector<16x1xf32> to vector<16x1xf32>
    %23 = vector.broadcast %22 : vector<16x1xf32> to vector<16x8xf32>
    %24 = vector.broadcast %cst_10 : f32 to vector<16x8xf32>
    %25 = arith.select %14, %23, %24 : vector<16x8xi1>, vector<16x8xf32>
    %cst_11 = arith.constant dense<0xFF800000> : vector<8xf32>
    %26 = vector.multi_reduction <maximumf>, %25, %cst_11 [0] : vector<16x8xf32> to vector<8xf32>
    %27 = vector.shape_cast %26 : vector<8xf32> to vector<1x8xf32>
    %c0_12 = arith.constant 0 : index
    %c0_13 = arith.constant 0 : index
    %28 = vector.load %arg8[%c0_12, %c0_13] : memref<8x8xf32, #tpu.memory_space<vmem>>, vector<8x8xf32>
    %cst_14 = arith.constant dense<0.000000e+00> : vector<8x1xf32>
    %29 = tpu.matmul %28, %27, %cst_14 {dimension_numbers = #tpu.dot_dimension_numbers<[1], [1], [0], [0], [0, 0, 1, 0], [], []>} : vector<8x8xf32>, vector<1x8xf32>, vector<8x1xf32> -> vector<8x1xf32>
    %c0_15 = arith.constant 0 : index
    %c0_16 = arith.constant 0 : index
    %30 = vector.load %arg7[%c0_15, %c0_16] : memref<8x1xf32, #tpu.memory_space<vmem>>, vector<8x1xf32>
    %31 = arith.maximumf %30, %29 : vector<8x1xf32>
    %32 = arith.subf %30, %31 : vector<8x1xf32>
    %33 = math.exp %32 : vector<8x1xf32>
    %c0_17 = arith.constant 0 : index
    %c0_18 = arith.constant 0 : index
    %34 = vector.load %arg7[%c0_17, %c0_18] : memref<8x1xf32, #tpu.memory_space<vmem>>, vector<8x1xf32>
    tpu.vector_store %arg7[%c0_17, %c0_18], %31 {strides = array<i32>} : memref<8x1xf32, #tpu.memory_space<vmem>>, vector<8x1xf32>,
    %cst_19 = arith.constant dense<0.000000e+00> : vector<16x1xf32>
    %35 = tpu.matmul %16, %31, %cst_19 {dimension_numbers = #tpu.dot_dimension_numbers<[1], [0], [0], [1], [0, 0, 1, 1], [], []>} : vector<16x8xf32>, vector<8x1xf32>, vector<16x1xf32> -> vector<16x1xf32>
    %36 = arith.subf %9, %35 : vector<16x1xf32>
    %37 = math.exp %36 : vector<16x1xf32>
    %38 = vector.broadcast %37 : vector<16x1xf32> to vector<16x128xf32>
    %39 = arith.mulf %38, %8 : vector<16x128xf32>
    %cst_20 = arith.constant dense<0.000000e+00> : vector<8x128xf32>
    %40 = tpu.matmul %21, %39, %cst_20 {dimension_numbers = #tpu.dot_dimension_numbers<[1], [0], [0], [1], [0, 0, 1, 1], [], []>} : vector<8x16xf32>, vector<16x128xf32>, vector<8x128xf32> -> vector<8x128xf32>
    %c0_21 = arith.constant 0 : index
    %c0_22 = arith.constant 0 : index
    %41 = vector.load %arg6[%c0_21, %c0_22] : memref<8x128xf32, #tpu.memory_space<vmem>>, vector<8x128xf32>
    %42 = vector.broadcast %33 : vector<8x1xf32> to vector<8x128xf32>
    %43 = arith.mulf %41, %42 : vector<8x128xf32>
    %44 = arith.addf %43, %40 : vector<8x128xf32>
    %c0_23 = arith.constant 0 : index
    %c0_24 = arith.constant 0 : index
    %45 = vector.load %arg6[%c0_23, %c0_24] : memref<8x128xf32, #tpu.memory_space<vmem>>, vector<8x128xf32>
    tpu.vector_store %arg6[%c0_23, %c0_24], %44 {strides = array<i32>} : memref<8x128xf32, #tpu.memory_space<vmem>>, vector<8x128xf32>,
    %c0_i32_25 = arith.constant 0 : i32
    %46 = arith.cmpi eq, %arg0, %c0_i32_25 : i32
    %47 = arith.extui %46 : i1 to i32
    %c0_i32_26 = arith.constant 0 : i32
    %48 = arith.cmpi ne, %47, %c0_i32_26 : i32
    scf.if %48 {
      %c0_27 = arith.constant 0 : index
      %c33 = arith.constant 33 : index
      %49 = vector.load %arg6[%c0_27, %c33] : memref<8x128xf32, #tpu.memory_space<vmem>>, vector<8x1xf32>
      %cst_28 = arith.constant 1.000000e-10 : f32
      %50 = vector.broadcast %cst_28 : f32 to vector<8x1xf32>
      %51 = arith.addf %49, %50 : vector<8x1xf32>
      %52 = tpu.reciprocal %51 {approx = true} : vector<8x1xf32> -> vector<8x1xf32>
      %53 = arith.mulf %51, %52 : vector<8x1xf32>
      %cst_29 = arith.constant 2.000000e+00 : f32
      %54 = vector.broadcast %cst_29 : f32 to vector<8x1xf32>
      %55 = arith.subf %54, %53 : vector<8x1xf32>
      %56 = arith.mulf %52, %55 : vector<8x1xf32>
      %c0_30 = arith.constant 0 : index
      %c0_31 = arith.constant 0 : index
      %57 = vector.load %arg6[%c0_30, %c0_31] : memref<8x128xf32, #tpu.memory_space<vmem>>, vector<8x128xf32>
      %58 = vector.broadcast %56 : vector<8x1xf32> to vector<8x128xf32>
      %59 = arith.mulf %57, %58 : vector<8x128xf32>
      %c0_32 = arith.constant 0 : index
      %c0_33 = arith.constant 0 : index
      %60 = vector.load %arg6[%c0_32, %c0_33] : memref<8x128xf32, #tpu.memory_space<vmem>>, vector<8x128xf32>
      tpu.vector_store %arg6[%c0_32, %c0_33], %59 {strides = array<i32>} : memref<8x128xf32, #tpu.memory_space<vmem>>, vector<8x128xf32>,
    } else {
    }
    return
  }
  func.func @transform_0(%arg0: i32) -> (i32, i32) {
    %c0_i32 = arith.constant 0 : i32
    %c0_i32_0 = arith.constant 0 : i32
    return %arg0, %c0_i32 : i32, i32
  }
  func.func @transform_1(%arg0: i32) -> (i32, i32) {
    %c0_i32 = arith.constant 0 : i32
    %c0_i32_0 = arith.constant 0 : i32
    return %c0_i32, %arg0 : i32, i32
  }
  func.func @transform_2(%arg0: i32) -> (i32, i32) {
    %c0_i32 = arith.constant 0 : i32
    %c0_i32_0 = arith.constant 0 : i32
    return %arg0, %c0_i32 : i32, i32
  }
  func.func @transform_3(%arg0: i32) -> (i32, i32) {
    %c0_i32 = arith.constant 0 : i32
    %c0_i32_0 = arith.constant 0 : i32
    %c0_i32_1 = arith.constant 0 : i32
    return %c0_i32, %c0_i32_0 : i32, i32
  }
  func.func @transform_4(%arg0: i32) -> (i32, i32) {
    %c0_i32 = arith.constant 0 : i32
    %c0_i32_0 = arith.constant 0 : i32
    %c0_i32_1 = arith.constant 0 : i32
    return %c0_i32, %c0_i32_0 : i32, i32
  }
  func.func @transform_5(%arg0: i32) -> (i32, i32) {
    %c0_i32 = arith.constant 0 : i32
    %c0_i32_0 = arith.constant 0 : i32
    %c0_i32_1 = arith.constant 0 : i32
    return %c0_i32, %c0_i32_0 : i32, i32
  }
}

</mosaic_0001>

<llo_original>
// kernel: tpu_custom_call.1
$region0: #{tpu_custom_call.1}
  #allocation0 [shape = 'u32[]', space=smem, size = 0x4, offset = 0x4, fixed_abs, tag = 'smem constant byte address 0x4 - core index']
  #allocation1 [shape = 'u32[144,128]{1,0:T(1,128)}', space=vmem, size = 0x12000, scoped, tag = 'internal scratch']
  #allocation2 [shape = 'f32[8,1]{1,0:T(8,128)}', space=vmem, size = 0x1000, scoped, tag = 'scratch operand']
  #allocation3 [shape = 'f32[8,8]{1,0:T(8,128)}', space=vmem, size = 0x1000, scoped, tag = 'scratch operand']
  %s0 = inlined_call_operand.vmem [shape: s32[16,1], index: 0, kind: input, shape index: {}]
  %s1 = inlined_call_operand.vmem [shape: s32[1,16], index: 1, kind: input, shape index: {}]
  %s2 = inlined_call_operand.vmem [shape: f32[16,32], index: 2, kind: input, shape index: {}]
  %s3 = inlined_call_operand.hbm [shape: f32[32,128], index: 3, kind: input, shape index: {}]
  %s4 = inlined_call_operand.vmem [shape: f32[1,128], index: 4, kind: input, shape index: {}]
  %s5 = inlined_call_operand.hbm [shape: f32[8,128], index: 5, kind: output, shape index: {}]
  %s6 = sld [smem:[#allocation0]]
  $region42: #{tpu_custom_call.1} parent=0
    _
  %s8 = ssub.s32 1, %s6
  %s9 = scalar_select 0, %s8, %s6
  $region1: #{tpu_custom_call.1} parent=0
    #allocation4 [shape = 'u8[16384]{0}', space=vmem, size = 0x4000, scoped, tag = 'input window, operand 3, single buffered']
    #allocation5 [shape = 's32[1]{0}', space=sflag, size = 0x4, scoped, tag = 'scoped memory for tpu_custom_call.1']
    #allocation6 [shape = 's32[1]{0}', space=sflag, size = 0x4, scoped, tag = 'scoped memory for tpu_custom_call.1']
    #allocation7 [shape = 'u8[4096]{0}', space=vmem, size = 0x1000, scoped, tag = 'output window, operand 0, single buffered']
    %10 = vsyncpa [#allocation5], 0
    %11 = vsyncpa [#allocation6], 0
    // Predicated region
    $region2: #{tpu_custom_call.1} parent=1 // pred_check
      _
    $region3: #{tpu_custom_call.1} parent=1 // pred_check_branch
      %13 = sbr.rel (0) target = $region5
    $region4: #{tpu_custom_call.1} parent=1 // pred_region
      _
    $region5: #{tpu_custom_call.1} parent=1 // pred_fallthru
      _
    // Predicated region
    $region6: #{tpu_custom_call.1} parent=1 // pred_check
      _
    $region7: #{tpu_custom_call.1} parent=1 // pred_check_branch
      %15 = sbr.rel (0) target = $region9
    $region8: #{tpu_custom_call.1} parent=1 // pred_region
      _
    $region9: #{tpu_custom_call.1} parent=1 // pred_fallthru
      _
    // Predicated region
    $region10: #{tpu_custom_call.1} parent=1 // pred_check
      _
    $region11: #{tpu_custom_call.1} parent=1 // pred_check_branch
      %17 = sbr.rel (0) target = $region13
    $region12: #{tpu_custom_call.1} parent=1 // pred_region
      _
    $region13: #{tpu_custom_call.1} parent=1 // pred_fallthru
      _
    // Predicated region
    $region14: #{tpu_custom_call.1} parent=1 // pred_check
      _
    $region15: #{tpu_custom_call.1} parent=1 // pred_check_branch
      %19 = sbr.rel (0) target = $region17
    $region16: #{tpu_custom_call.1} parent=1 // pred_region
      %s21 = ssub.s32 512, 512
      %22 = vsyncadd [#allocation5], %s21
      %s23 = sshll.u32 [#allocation4], 4
      %s24 = int_to_ptr.vmem [resolvable:$true] %s23
      %29 = dma.hbm_to_vmem [thread:$0]  %s3, 512, %s24, [#allocation5], 128, 128, 8
    $region17: #{tpu_custom_call.1} parent=1 // pred_fallthru
      _
    // Predicated region
    $region18: #{tpu_custom_call.1} parent=1 // pred_check
      _
    $region19: #{tpu_custom_call.1} parent=1 // pred_check_branch
      %31 = sbr.rel (0) target = $region21
    $region20: #{tpu_custom_call.1} parent=1 // pred_region
      _
    $region21: #{tpu_custom_call.1} parent=1 // pred_fallthru
      _
    // Predicated region
    $region22: #{tpu_custom_call.1} parent=1 // pred_check
      _
    $region23: #{tpu_custom_call.1} parent=1 // pred_check_branch
      %33 = sbr.rel (0) target = $region25
    $region24: #{tpu_custom_call.1} parent=1 // pred_region
      %34 = dma.done [#allocation5], 512
    $region25: #{tpu_custom_call.1} parent=1 // pred_fallthru
      _
    %p35 = scmp.eq.s32.totalorder 0, 0
    // Predicated region
    $region26: #{tpu_custom_call.1} parent=1 // pred_check
      %p36 = pneg %p35
    $region27: #{tpu_custom_call.1} parent=1 // pred_check_branch
      %38 = sbr.rel (%p36) target = $region29
    $region28: #{tpu_custom_call.1} parent=1 // pred_region
      %39 = vst [vmem:[#allocation7] sm:$0xff] 0.0
      %vm40 = vcmask 7168
      %41 = vst.msk [vmem:[#allocation2] sm:$0xff] %vm40, -1e+30
      %v42 = vlaneseq
      %v43 = vshrl.u32 %v42, 7
      %v44 = vlaneseq
      %v45 = vand.u32 %v44, 127
      %vm46 = vcmp.eq.s32.totalorder %v43, %v45
      %v47 = vsel %vm46, 1, 0
      %v48 = vcvt.s32.f32 %v47
      %vm49 = vcmask 64512
      %50 = vst.msk [vmem:[#allocation3] sm:$0xff] %vm49, %v48
    $region29: #{tpu_custom_call.1} parent=1 // pred_fallthru
      _
    %v51 = vld [vmem:[%s2] sm:$0xff]
    %v52 = vld [vmem:[%s2 + $0x8] sm:$0xff]
    %v53 = vld [vmem:[#allocation4] sm:$0xff]
    %v54 = vld [vmem:[#allocation4 + $0x8] sm:$0xff]
    %v55 = vld [vmem:[#allocation4 + $0x10] sm:$0xff]
    %v56 = vld [vmem:[#allocation4 + $0x18] sm:$0xff]
    %v57 = vld [vmem:[%s4] sm:$0x1]
    %v59 = vlaneseq
    %v60 = vshrl.u32 %v59, 7
    %v61 = vsub.s32 0, %v60
    %v62 = vrot.slane %v57, %v61
    %vm64 = vcmask 261120
    %v66 = vsel %vm64, %v51, 0
    %v69 = vsel %vm64, %v52, 0
    %71 = vmatprep.subr.mxu0 0.0
    %72 = vmatpush1.msra.mxu0 0.0
    %73 = vmatprep.subr.mxu0 0.0
    %74 = vmatpush1.msra.mxu0 0.0
    %75 = vmatprep.subr.mxu0 0.0
    %76 = vmatpush1.msra.mxu0 0.0
    %77 = vmatprep.subr.mxu0 0.0
    %78 = vmatpush1.msra.mxu0 0.0
    %79 = vmatprep.subr.mxu0 0.0
    %80 = vmatpush1.msra.mxu0 0.0
    %81 = vmatprep.subr.mxu0 0.0
    %82 = vmatpush1.msra.mxu0 0.0
    %83 = vmatprep.subr.mxu0 0.0
    %84 = vmatpush1.msra.mxu0 0.0
    %85 = vmatprep.subr.mxu0 0.0
    %86 = vmatpush1.msra.mxu0 0.0
    %87 = vmatprep.subr.mxu0 0.0
    %88 = vmatpush1.msra.mxu0 0.0
    %89 = vmatprep.subr.mxu0 0.0
    %90 = vmatpush1.msra.mxu0 0.0
    %91 = vmatprep.subr.mxu0 0.0
    %92 = vmatpush1.msra.mxu0 0.0
    %93 = vmatprep.subr.mxu0 0.0
    %94 = vmatpush1.msra.mxu0 0.0
    %95 = vmatprep.subr.mxu0 0.0
    %96 = vmatpush1.msra.mxu0 %v56
    %97 = vmatprep.subr.mxu0 0.0
    %98 = vmatpush1.msra.mxu0 %v55
    %99 = vmatprep.subr.mxu0 0.0
    %100 = vmatpush1.msra.mxu0 %v54
    %101 = vmatprep.subr.mxu0 0.0
    %102 = vmatpush1.msra.mxu0 %v53
    %103 = vmatprep.subr.mxu0 0.0
    %104 = vmatpush2.msra.mxu0 0.0
    %105 = vmatprep.subr.mxu0 0.0
    %106 = vmatpush2.msra.mxu0 0.0
    %107 = vmatprep.subr.mxu0 0.0
    %108 = vmatpush2.msra.mxu0 0.0
    %109 = vmatprep.subr.mxu0 0.0
    %110 = vmatpush2.msra.mxu0 0.0
    %111 = vmatprep.subr.mxu0 0.0
    %112 = vmatpush2.msra.mxu0 0.0
    %113 = vmatprep.subr.mxu0 0.0
    %114 = vmatpush2.msra.mxu0 0.0
    %115 = vmatprep.subr.mxu0 0.0
    %116 = vmatpush2.msra.mxu0 0.0
    %117 = vmatprep.subr.mxu0 0.0
    %118 = vmatpush2.msra.mxu0 0.0
    %119 = vmatprep.subr.mxu0 0.0
    %120 = vmatpush2.msra.mxu0 0.0
    %121 = vmatprep.subr.mxu0 0.0
    %122 = vmatpush2.msra.mxu0 0.0
    %123 = vmatprep.subr.mxu0 0.0
    %124 = vmatpush2.msra.mxu0 0.0
    %125 = vmatprep.subr.mxu0 0.0
    %126 = vmatpush2.msra.mxu0 0.0
    %127 = vmatprep.subr.mxu0 0.0
    %128 = vmatpush2.msra.mxu0 0.0
    %129 = vmatprep.subr.mxu0 0.0
    %130 = vmatpush2.msra.mxu0 0.0
    %131 = vmatprep.subr.mxu0 0.0
    %132 = vmatpush2.msra.mxu0 0.0
    %133 = vmatprep.subr.mxu0 0.0
    %134 = vmatpush2.msra.mxu0 0.0
    %135 = vmatprep.mubr.f32.mxu0 0.0
    %136 = vmatmul.mubr.f32.gmra.mxu0 %v66
    %v137 = vpop.f32.mrf.mxu0
    %v138 = vadd.f32 %v62, %v137
    %v139 = vpop.f32.mrf.mxu0
    %140 = vmatprep.mubr.f32.mxu0 0.0
    %141 = vmatmul.mubr.f32.gmra.mxu0 %v69
    %v142 = vpop.f32.mrf.mxu0
    %v143 = vadd.f32 %v62, %v142
    %v144 = vpop.f32.mrf.mxu0
    %145 = vdwg.mxu0
    %v146 = vld [vmem:[%s0] sm:$0xff]
    %v147 = vld [vmem:[%s0 + $0x8] sm:$0xff]
    %v148 = vld [vmem:[%s1] sm:$0x1]
    %v149 = vlaneseq
    %v150 = vand.u32 %v149, 127
    %151 = vset.pattern.permute.xlu0 0
    %152 = vperm.xlu0 %151, %v146
    %v153 = vpop.permute.xlu0 %152
    %154 = vset.pattern.permute.xlu0 0
    %155 = vperm.xlu0 %154, %v147
    %v156 = vpop.permute.xlu0 %155
    %vm157 = vcmp.eq.s32.totalorder %v153, %v150
    %vm158 = vcmp.eq.s32.totalorder %v156, %v150
    %v159 = vsel %vm157, 1, 0
    %v160 = vsel %vm158, 1, 0
    %v161 = vcvt.s32.f32 %v159
    %v162 = vcvt.s32.f32 %v160
    %v163 = vlaneseq
    %v164 = vshrl.u32 %v163, 7
    %v165 = vlaneseq
    %v166 = vshrl.u32 %v165, 7
    %v167 = vsub.s32 0, %v166
    %v168 = vrot.slane %v148, %v167
    %vm169 = vcmp.eq.s32.totalorder %v164, %v168
    %v170 = vsel %vm169, 1, 0
    %v171 = vcvt.s32.f32 %v170
    %173 = vset.pattern.permute.xlu0 32
    %174 = vperm.xlu0 %173, %v138
    %v175 = vpop.permute.xlu0 %174
    %178 = vset.pattern.permute.xlu0 32
    %179 = vperm.xlu0 %178, %v143
    %v180 = vpop.permute.xlu0 %179
    %v182 = vsel %vm157, %v175, -1e+30
    %v183 = vsel %vm158, %v180, -1e+30
    %vm184 = vcmask 64512
    %v185 = vsel %vm184, %v182, -inf
    %v186 = vsel %vm184, %v183, -inf
    %v187 = vmax.f32 %v185, %v186
    %v188 = vrot.slane %v187, 4
    %v189 = vmax.f32 %v187, %v188
    %v190 = vrot.slane %v189, 2
    %v191 = vmax.f32 %v189, %v190
    %v192 = vrot.slane %v191, 1
    %v193 = vmax.f32 %v191, %v192
    %v194 = vld [vmem:[#allocation3] sm:$0xff]
    %v195 = vmul.f32 %v194, %v193
    %v196 = vsel %vm184, %v195, 0.0
    %197 = vadd.xlane.f32.xlu0 %v196
    %v198 = vpop.xlane.xlu0 %197
    %v199 = vld [vmem:[#allocation2] sm:$0xff]
    %v200 = vmax.f32 %v199, %v198
    %v201 = vsub.f32 %v199, %v200
    %v202 = vmul.f32 %v201, 1.442695
    %v203 = vpow.pop %v202
    %vm204 = vcmask 7168
    %205 = vst.msk [vmem:[#allocation2] sm:$0xff] %vm204, %v200
    %v207 = vsel %vm184, %v161, 0
    %v210 = vsel %vm184, %v162, 0
    %212 = vmatprep.subr.mxu0 0.0
    %213 = vmatpush1.msra.mxu0 0.0
    %214 = vmatprep.subr.mxu0 0.0
    %215 = vmatpush1.msra.mxu0 0.0
    %216 = vmatprep.subr.mxu0 0.0
    %217 = vmatpush1.msra.mxu0 0.0
    %218 = vmatprep.subr.mxu0 0.0
    %219 = vmatpush1.msra.mxu0 0.0
    %220 = vmatprep.subr.mxu0 0.0
    %221 = vmatpush1.msra.mxu0 0.0
    %222 = vmatprep.subr.mxu0 0.0
    %223 = vmatpush1.msra.mxu0 0.0
    %224 = vmatprep.subr.mxu0 0.0
    %225 = vmatpush1.msra.mxu0 0.0
    %226 = vmatprep.subr.mxu0 0.0
    %227 = vmatpush1.msra.mxu0 0.0
    %228 = vmatprep.subr.mxu0 0.0
    %229 = vmatpush1.msra.mxu0 0.0
    %230 = vmatprep.subr.mxu0 0.0
    %231 = vmatpush1.msra.mxu0 0.0
    %232 = vmatprep.subr.mxu0 0.0
    %233 = vmatpush1.msra.mxu0 0.0
    %234 = vmatprep.subr.mxu0 0.0
    %235 = vmatpush1.msra.mxu0 0.0
    %236 = vmatprep.subr.mxu0 0.0
    %237 = vmatpush1.msra.mxu0 0.0
    %238 = vmatprep.subr.mxu0 0.0
    %239 = vmatpush1.msra.mxu0 0.0
    %240 = vmatprep.subr.mxu0 0.0
    %241 = vmatpush1.msra.mxu0 0.0
    %242 = vmatprep.subr.mxu0 0.0
    %243 = vmatpush1.msra.mxu0 %v200
    %244 = vmatprep.subr.mxu0 0.0
    %245 = vmatpush2.msra.mxu0 0.0
    %246 = vmatprep.subr.mxu0 0.0
    %247 = vmatpush2.msra.mxu0 0.0
    %248 = vmatprep.subr.mxu0 0.0
    %249 = vmatpush2.msra.mxu0 0.0
    %250 = vmatprep.subr.mxu0 0.0
    %251 = vmatpush2.msra.mxu0 0.0
    %252 = vmatprep.subr.mxu0 0.0
    %253 = vmatpush2.msra.mxu0 0.0
    %254 = vmatprep.subr.mxu0 0.0
    %255 = vmatpush2.msra.mxu0 0.0
    %256 = vmatprep.subr.mxu0 0.0
    %257 = vmatpush2.msra.mxu0 0.0
    %258 = vmatprep.subr.mxu0 0.0
    %259 = vmatpush2.msra.mxu0 0.0
    %260 = vmatprep.subr.mxu0 0.0
    %261 = vmatpush2.msra.mxu0 0.0
    %262 = vmatprep.subr.mxu0 0.0
    %263 = vmatpush2.msra.mxu0 0.0
    %264 = vmatprep.subr.mxu0 0.0
    %265 = vmatpush2.msra.mxu0 0.0
    %266 = vmatprep.subr.mxu0 0.0
    %267 = vmatpush2.msra.mxu0 0.0
    %268 = vmatprep.subr.mxu0 0.0
    %269 = vmatpush2.msra.mxu0 0.0
    %270 = vmatprep.subr.mxu0 0.0
    %271 = vmatpush2.msra.mxu0 0.0
    %272 = vmatprep.subr.mxu0 0.0
    %273 = vmatpush2.msra.mxu0 0.0
    %274 = vmatprep.subr.mxu0 0.0
    %275 = vmatpush2.msra.mxu0 0.0
    %276 = vmatprep.mubr.f32.mxu0 0.0
    %277 = vmatmul.mubr.f32.gmra.mxu0 %v207
    %v278 = vpop.f32.mrf.mxu0
    %v279 = vadd.f32 0.0, %v278
    %v280 = vpop.f32.mrf.mxu0
    %281 = vmatprep.mubr.f32.mxu0 0.0
    %282 = vmatmul.mubr.f32.gmra.mxu0 %v210
    %v283 = vpop.f32.mrf.mxu0
    %v284 = vadd.f32 0.0, %v283
    %v285 = vpop.f32.mrf.mxu0
    %286 = vdwg.mxu0
    %289 = vrot.lane.b32.xlu0 %v279, 32
    %v290 = vpop.permute.xlu0 %289
    %291 = vrot.lane.b32.xlu0 %v284, 32
    %v292 = vpop.permute.xlu0 %291
    %v295 = vsub.f32 %v138, %v290
    %v296 = vsub.f32 %v143, %v292
    %v297 = vmul.f32 %v295, 1.442695
    %v298 = vpow.pop %v297
    %v299 = vmul.f32 %v296, 1.442695
    %v300 = vpow.pop %v299
    %302 = vset.pattern.permute.xlu0 32
    %303 = vperm.xlu0 %302, %v298
    %v304 = vpop.permute.xlu0 %303
    %307 = vset.pattern.permute.xlu0 32
    %308 = vperm.xlu0 %307, %v300
    %v309 = vpop.permute.xlu0 %308
    %v311 = vmul.f32 %v304, %v138
    %v312 = vmul.f32 %v309, %v143
    %vm313 = vcmask 130048
    %v315 = vsel %vm313, %v171, 0
    %317 = vmatprep.subr.mxu0 0.0
    %318 = vmatpush1.msra.mxu0 0.0
    %319 = vmatprep.subr.mxu0 0.0
    %320 = vmatpush1.msra.mxu0 0.0
    %321 = vmatprep.subr.mxu0 0.0
    %322 = vmatpush1.msra.mxu0 0.0
    %323 = vmatprep.subr.mxu0 0.0
    %324 = vmatpush1.msra.mxu0 0.0
    %325 = vmatprep.subr.mxu0 0.0
    %326 = vmatpush1.msra.mxu0 0.0
    %327 = vmatprep.subr.mxu0 0.0
    %328 = vmatpush1.msra.mxu0 0.0
    %329 = vmatprep.subr.mxu0 0.0
    %330 = vmatpush1.msra.mxu0 0.0
    %331 = vmatprep.subr.mxu0 0.0
    %332 = vmatpush1.msra.mxu0 0.0
    %333 = vmatprep.subr.mxu0 0.0
    %334 = vmatpush1.msra.mxu0 0.0
    %335 = vmatprep.subr.mxu0 0.0
    %336 = vmatpush1.msra.mxu0 0.0
    %337 = vmatprep.subr.mxu0 0.0
    %338 = vmatpush1.msra.mxu0 0.0
    %339 = vmatprep.subr.mxu0 0.0
    %340 = vmatpush1.msra.mxu0 0.0
    %341 = vmatprep.subr.mxu0 0.0
    %342 = vmatpush1.msra.mxu0 0.0
    %343 = vmatprep.subr.mxu0 0.0
    %344 = vmatpush1.msra.mxu0 0.0
    %345 = vmatprep.subr.mxu0 0.0
    %346 = vmatpush1.msra.mxu0 %v312
    %347 = vmatprep.subr.mxu0 0.0
    %348 = vmatpush1.msra.mxu0 %v311
    %349 = vmatprep.subr.mxu0 0.0
    %350 = vmatpush2.msra.mxu0 0.0
    %351 = vmatprep.subr.mxu0 0.0
    %352 = vmatpush2.msra.mxu0 0.0
    %353 = vmatprep.subr.mxu0 0.0
    %354 = vmatpush2.msra.mxu0 0.0
    %355 = vmatprep.subr.mxu0 0.0
    %356 = vmatpush2.msra.mxu0 0.0
    %357 = vmatprep.subr.mxu0 0.0
    %358 = vmatpush2.msra.mxu0 0.0
    %359 = vmatprep.subr.mxu0 0.0
    %360 = vmatpush2.msra.mxu0 0.0
    %361 = vmatprep.subr.mxu0 0.0
    %362 = vmatpush2.msra.mxu0 0.0
    %363 = vmatprep.subr.mxu0 0.0
    %364 = vmatpush2.msra.mxu0 0.0
    %365 = vmatprep.subr.mxu0 0.0
    %366 = vmatpush2.msra.mxu0 0.0
    %367 = vmatprep.subr.mxu0 0.0
    %368 = vmatpush2.msra.mxu0 0.0
    %369 = vmatprep.subr.mxu0 0.0
    %370 = vmatpush2.msra.mxu0 0.0
    %371 = vmatprep.subr.mxu0 0.0
    %372 = vmatpush2.msra.mxu0 0.0
    %373 = vmatprep.subr.mxu0 0.0
    %374 = vmatpush2.msra.mxu0 0.0
    %375 = vmatprep.subr.mxu0 0.0
    %376 = vmatpush2.msra.mxu0 0.0
    %377 = vmatprep.subr.mxu0 0.0
    %378 = vmatpush2.msra.mxu0 0.0
    %379 = vmatprep.subr.mxu0 0.0
    %380 = vmatpush2.msra.mxu0 0.0
    %381 = vmatprep.mubr.f32.mxu0 0.0
    %382 = vmatmul.mubr.f32.gmra.mxu0 %v315
    %v383 = vpop.f32.mrf.mxu0
    %v384 = vadd.f32 0.0, %v383
    %v385 = vpop.f32.mrf.mxu0
    %386 = vdwg.mxu0
    %v387 = vld [vmem:[#allocation7] sm:$0xff]
    %389 = vset.pattern.permute.xlu0 0
    %390 = vperm.xlu0 %389, %v203
    %v391 = vpop.permute.xlu0 %390
    %v393 = vmul.f32 %v387, %v391
    %v394 = vadd.f32 %v393, %v384
    %395 = vst [vmem:[#allocation7] sm:$0xff] %v394
    // Predicated region
    $region30: #{tpu_custom_call.1} parent=1 // pred_check
      %p396 = pneg %p35
    $region31: #{tpu_custom_call.1} parent=1 // pred_check_branch
      %398 = sbr.rel (%p396) target = $region33
    $region32: #{tpu_custom_call.1} parent=1 // pred_region
      %v399 = vld [vmem:[#allocation7] sm:$0xff]
      %v400 = vadd.f32 %v399, 1e-10
      %v401 = vrcp.pop %v400
      %v402 = vmul.f32 %v400, %v401
      %v403 = vsub.f32 2.0, %v402
      %v404 = vmul.f32 %v401, %v403
      %406 = vset.pattern.permute.xlu0 33
      %407 = vperm.xlu0 %406, %v404
      %v408 = vpop.permute.xlu0 %407
      %v410 = vmul.f32 %v399, %v408
      %411 = vst [vmem:[#allocation7] sm:$0xff] %v410
    $region33: #{tpu_custom_call.1} parent=1 // pred_fallthru
      _
    // Predicated region
    $region34: #{tpu_custom_call.1} parent=1 // pred_check
      _
    $region35: #{tpu_custom_call.1} parent=1 // pred_check_branch
      %413 = sbr.rel (0) target = $region37
    $region36: #{tpu_custom_call.1} parent=1 // pred_region
      %s415 = ssub.s32 128, 128
      %416 = vsyncadd [#allocation6], %s415
      %s418 = sshll.u32 [#allocation7], 4
      %s419 = int_to_ptr.vmem [resolvable:$true] %s418
      %421 = dma.vmem_to_hbm [thread:$0]  %s419, 128, %s5, [#allocation6]
    $region37: #{tpu_custom_call.1} parent=1 // pred_fallthru
      _
    // Predicated region
    $region38: #{tpu_custom_call.1} parent=1 // pred_check
      _
    $region39: #{tpu_custom_call.1} parent=1 // pred_check_branch
      %423 = sbr.rel (0) target = $region41
    $region40: #{tpu_custom_call.1} parent=1 // pred_region
      %424 = dma.done [#allocation6], 128
    $region41: #{tpu_custom_call.1} parent=1 // pred_fallthru
      _
    %425 = vsyncpa [#allocation5], 1
    %426 = vsyncpa [#allocation6], 1

</llo_original>
